<compile_context>
chip_gen: v7x
topology: tpu7x:2x2x1
jax: 0.10.0
libtpu: 0.0.40
codegen_flags: <defaults>
</compile_context>

<pallas_src>
import functools

import jax
import jax.numpy as jnp
from jax.experimental import pallas as pl
from jax.experimental.pallas import tpu as pltpu


def _mc_dropout_kernel(seed_ref, x_ref, w1_ref, b1_ref, w2_ref, b2_ref,
                       mean_ref, std_ref,
                       *, num_samples, dropout_prob):
    S = num_samples
    B = x_ref.shape[0]
    H = w1_ref.shape[1]

    # ---- sample-invariant first layer (computed once, not per sample) ----
    h = jnp.dot(x_ref[...], w1_ref[...], preferred_element_type=jnp.float32)
    h = jnp.maximum(h + b1_ref[...], 0.0)                      # (B, H) f32

    # ---- one masked-activation slab for all samples: (S*B, H) ----
    h_all = jnp.tile(h, (S, 1))                                 # (S*B, H)

    # Counter-based hash RNG (splitmix32-ish), fresh bits per (sample, elem).
    rows = jax.lax.broadcasted_iota(jnp.int32, (S * B, H), 0).astype(jnp.uint32)
    cols = jax.lax.broadcasted_iota(jnp.int32, (S * B, H), 1).astype(jnp.uint32)
    seed_u = seed_ref[0].astype(jnp.uint32)
    r = (rows * jnp.uint32(H) + cols) ^ (seed_u * jnp.uint32(0x9E3779B9))
    r = (r ^ (r >> 16)) * jnp.uint32(0x7FEB352D)
    r = (r ^ (r >> 15)) * jnp.uint32(0x846CA68B)
    r = r ^ (r >> 16)
    # 31-bit value -> signed compare against integer threshold (no float cvt).
    r31 = (r >> 1).astype(jnp.int32)
    thresh = jnp.int32(int(dropout_prob * (1 << 31)))
    keep = (r31 >= thresh).astype(jnp.float32)                  # P(keep)=1-p
    scale = jnp.float32(1.0 / (1.0 - dropout_prob))
    h_all = h_all * (keep * scale)                              # inverted dropout

    # ---- one batched second matmul for all samples ----
    y_all = jnp.dot(h_all.astype(jnp.bfloat16), w2_ref[...],
                    preferred_element_type=jnp.float32)
    y_all = y_all + b2_ref[...]                                 # (S*B, D_out) f32

    # ---- statistics over the sample axis (static unroll, S is small) ----
    ssum = jnp.zeros((B, y_all.shape[1]), jnp.float32)
    for s in range(S):
        ssum = ssum + y_all[s * B:(s + 1) * B, :]
    mean = ssum * jnp.float32(1.0 / S)

    ssq = jnp.zeros_like(ssum)
    for s in range(S):
        d = y_all[s * B:(s + 1) * B, :] - mean
        ssq = ssq + d * d
    # unbiased variance (correction=1), matching torch.std(dim=0) default.
    var = ssq * jnp.float32(1.0 / (S - 1))

    mean_ref[...] = mean
    std_ref[...] = jnp.sqrt(jnp.maximum(var, 0.0))


def monte_carlo_dropout_forward(x, w1, b1, w2, b2, seed,
                                *, num_samples=10, dropout_prob=0.2):
    assert num_samples >= 2, "unbiased std needs num_samples >= 2"
    B, _ = x.shape
    D_out = w2.shape[1]

    kernel = functools.partial(_mc_dropout_kernel,
                               num_samples=num_samples,
                               dropout_prob=dropout_prob)

    vmem = pl.BlockSpec(memory_space=pltpu.MemorySpace.VMEM)
    smem = pl.BlockSpec(memory_space=pltpu.MemorySpace.SMEM)

    return pl.pallas_call(
        kernel,
        out_shape=(
            jax.ShapeDtypeStruct((B, D_out), jnp.float32),   # mean
            jax.ShapeDtypeStruct((B, D_out), jnp.float32),   # uncertainty (std)
        ),
        in_specs=[smem, vmem, vmem, vmem, vmem, vmem],
        out_specs=(vmem, vmem),
    )(
        seed,
        x.astype(jnp.bfloat16),    # bf16 MXU inputs, f32 accumulation
        w1.astype(jnp.bfloat16),
        b1.astype(jnp.float32),
        w2.astype(jnp.bfloat16),
        b2.astype(jnp.float32),
    )


if __name__ == "__main__":
    key = jax.random.PRNGKey(0)
    k_x, k_w1, k_b1, k_w2, k_b2 = jax.random.split(key, 5)

    B, D_in, H, D_out = 8, 32, 128, 32
    num_samples = 10
    dropout_prob = 0.2

    x = jax.random.normal(k_x, (B, D_in), dtype=jnp.float32)
    # deterministic synthetic parameters (no checkpoint loading)
    w1 = jax.random.normal(k_w1, (D_in, H), dtype=jnp.float32) * 0.1
    b1 = jax.random.normal(k_b1, (1, H), dtype=jnp.float32) * 0.01
    w2 = jax.random.normal(k_w2, (H, D_out), dtype=jnp.float32) * 0.1
    b2 = jax.random.normal(k_b2, (1, D_out), dtype=jnp.float32) * 0.01
    seed = jnp.array([1234], dtype=jnp.int32)

    mean_out, uncertainty = monte_carlo_dropout_forward(
        x, w1, b1, w2, b2, seed,
        num_samples=num_samples, dropout_prob=dropout_prob)
    jax.block_until_ready((mean_out, uncertainty))

    assert mean_out.shape == (B, D_out) and uncertainty.shape == (B, D_out)
    assert bool(jnp.all(jnp.isfinite(mean_out)))
    assert bool(jnp.all(jnp.isfinite(uncertainty)))
    assert bool(jnp.all(uncertainty >= 0.0))
    print("KERNEL_OK")
</pallas_src>

<mosaic_0001>
module attributes {stable_mosaic.version = 11 : i64} {
  func.func @_mc_dropout_kernel(%arg0: memref<1xi32, #tpu.memory_space<smem>>, %arg1: memref<8x32xbf16, #tpu.memory_space<vmem>>, %arg2: memref<32x128xbf16, #tpu.memory_space<vmem>>, %arg3: memref<1x128xf32, #tpu.memory_space<vmem>>, %arg4: memref<128x32xbf16, #tpu.memory_space<vmem>>, %arg5: memref<1x32xf32, #tpu.memory_space<vmem>>, %arg6: memref<8x32xf32, #tpu.memory_space<vmem>>, %arg7: memref<8x32xf32, #tpu.memory_space<vmem>>) attributes {dimension_semantics = [], scalar_prefetch = 0 : i64, scratch_operands = 0 : i64, tpu.core_type = #tpu.core_type<tc>} {
    %c0 = arith.constant 0 : index
    %c0_0 = arith.constant 0 : index
    %0 = vector.load %arg1[%c0, %c0_0] : memref<8x32xbf16, #tpu.memory_space<vmem>>, vector<8x32xbf16>
    %c0_1 = arith.constant 0 : index
    %c0_2 = arith.constant 0 : index
    %1 = vector.load %arg2[%c0_1, %c0_2] : memref<32x128xbf16, #tpu.memory_space<vmem>>, vector<32x128xbf16>
    %cst = arith.constant dense<0.000000e+00> : vector<8x128xf32>
    %2 = tpu.matmul %0, %1, %cst {dimension_numbers = #tpu.dot_dimension_numbers<[1], [0], [0], [1], [0, 0, 1, 1], [], []>} : vector<8x32xbf16>, vector<32x128xbf16>, vector<8x128xf32> -> vector<8x128xf32>
    %c0_3 = arith.constant 0 : index
    %c0_4 = arith.constant 0 : index
    %3 = vector.load %arg3[%c0_3, %c0_4] : memref<1x128xf32, #tpu.memory_space<vmem>>, vector<1x128xf32>
    %4 = vector.broadcast %3 : vector<1x128xf32> to vector<8x128xf32>
    %5 = arith.addf %2, %4 : vector<8x128xf32>
    %cst_5 = arith.constant 0.000000e+00 : f32
    %6 = vector.broadcast %cst_5 : f32 to vector<8x128xf32>
    %7 = arith.maximumf %5, %6 : vector<8x128xf32>
    %8 = tpu.concatenate %7, %7, %7, %7, %7, %7, %7, %7, %7, %7 in 0 : vector<8x128xf32>, vector<8x128xf32>, vector<8x128xf32>, vector<8x128xf32>, vector<8x128xf32>, vector<8x128xf32>, vector<8x128xf32>, vector<8x128xf32>, vector<8x128xf32>, vector<8x128xf32> -> vector<80x128xf32>
    %9 = tpu.iota {dimensions = array<i32: 0>} : vector<80x128xi32>
    %10 = tpu.iota {dimensions = array<i32: 1>} : vector<80x128xi32>
    %c0_6 = arith.constant 0 : index
    %11 = memref.load %arg0[%c0_6] : memref<1xi32, #tpu.memory_space<smem>>
    %c128_i32 = arith.constant 128 : i32
    %12 = vector.broadcast %c128_i32 : i32 to vector<80x128xi32>
    %13 = arith.muli %9, %12 : vector<80x128xi32>
    %14 = arith.addi %13, %10 : vector<80x128xi32>
    %c-1640531527_i32 = arith.constant -1640531527 : i32
    %15 = arith.muli %11, %c-1640531527_i32 : i32
    %16 = vector.broadcast %15 : i32 to vector<80x128xi32>
    %17 = arith.xori %14, %16 : vector<80x128xi32>
    %c16_i32 = arith.constant 16 : i32
    %18 = vector.broadcast %c16_i32 : i32 to vector<80x128xi32>
    %19 = arith.shrui %17, %18 : vector<80x128xi32>
    %20 = arith.xori %17, %19 : vector<80x128xi32>
    %c2146121005_i32 = arith.constant 2146121005 : i32
    %21 = vector.broadcast %c2146121005_i32 : i32 to vector<80x128xi32>
    %22 = arith.muli %20, %21 : vector<80x128xi32>
    %c15_i32 = arith.constant 15 : i32
    %23 = vector.broadcast %c15_i32 : i32 to vector<80x128xi32>
    %24 = arith.shrui %22, %23 : vector<80x128xi32>
    %25 = arith.xori %22, %24 : vector<80x128xi32>
    %c-2073254261_i32 = arith.constant -2073254261 : i32
    %26 = vector.broadcast %c-2073254261_i32 : i32 to vector<80x128xi32>
    %27 = arith.muli %25, %26 : vector<80x128xi32>
    %c16_i32_7 = arith.constant 16 : i32
    %28 = vector.broadcast %c16_i32_7 : i32 to vector<80x128xi32>
    %29 = arith.shrui %27, %28 : vector<80x128xi32>
    %30 = arith.xori %27, %29 : vector<80x128xi32>
    %c1_i32 = arith.constant 1 : i32
    %31 = vector.broadcast %c1_i32 : i32 to vector<80x128xi32>
    %32 = arith.shrui %30, %31 : vector<80x128xi32>
    %c429496729_i32 = arith.constant 429496729 : i32
    %33 = vector.broadcast %c429496729_i32 : i32 to vector<80x128xi32>
    %34 = arith.cmpi sge, %32, %33 : vector<80x128xi32>
    %35 = arith.extui %34 : vector<80x128xi1> to vector<80x128xi32>
    %36 = arith.sitofp %35 : vector<80x128xi32> to vector<80x128xf32>
    %cst_8 = arith.constant 1.250000e+00 : f32
    %37 = vector.broadcast %cst_8 : f32 to vector<80x128xf32>
    %38 = arith.mulf %36, %37 : vector<80x128xf32>
    %39 = arith.mulf %8, %38 : vector<80x128xf32>
    %40 = arith.truncf %39 : vector<80x128xf32> to vector<80x128xbf16>
    %c0_9 = arith.constant 0 : index
    %c0_10 = arith.constant 0 : index
    %41 = vector.load %arg4[%c0_9, %c0_10] : memref<128x32xbf16, #tpu.memory_space<vmem>>, vector<128x32xbf16>
    %cst_11 = arith.constant dense<0.000000e+00> : vector<80x32xf32>
    %42 = tpu.matmul %40, %41, %cst_11 {dimension_numbers = #tpu.dot_dimension_numbers<[1], [0], [0], [1], [0, 0, 1, 1], [], []>} : vector<80x128xbf16>, vector<128x32xbf16>, vector<80x32xf32> -> vector<80x32xf32>
    %c0_12 = arith.constant 0 : index
    %c0_13 = arith.constant 0 : index
    %43 = vector.load %arg5[%c0_12, %c0_13] : memref<1x32xf32, #tpu.memory_space<vmem>>, vector<1x32xf32>
    %44 = vector.broadcast %43 : vector<1x32xf32> to vector<80x32xf32>
    %45 = arith.addf %42, %44 : vector<80x32xf32>
    %cst_14 = arith.constant 0.000000e+00 : f32
    %46 = vector.broadcast %cst_14 : f32 to vector<8x32xf32>
    %47 = vector.extract_strided_slice %45 {offsets = [0, 0], sizes = [8, 32], strides = [1, 1]} : vector<80x32xf32> to vector<8x32xf32>
    %48 = arith.addf %46, %47 : vector<8x32xf32>
    %49 = vector.extract_strided_slice %45 {offsets = [8, 0], sizes = [8, 32], strides = [1, 1]} : vector<80x32xf32> to vector<8x32xf32>
    %50 = arith.addf %48, %49 : vector<8x32xf32>
    %51 = vector.extract_strided_slice %45 {offsets = [16, 0], sizes = [8, 32], strides = [1, 1]} : vector<80x32xf32> to vector<8x32xf32>
    %52 = arith.addf %50, %51 : vector<8x32xf32>
    %53 = vector.extract_strided_slice %45 {offsets = [24, 0], sizes = [8, 32], strides = [1, 1]} : vector<80x32xf32> to vector<8x32xf32>
    %54 = arith.addf %52, %53 : vector<8x32xf32>
    %55 = vector.extract_strided_slice %45 {offsets = [32, 0], sizes = [8, 32], strides = [1, 1]} : vector<80x32xf32> to vector<8x32xf32>
    %56 = arith.addf %54, %55 : vector<8x32xf32>
    %57 = vector.extract_strided_slice %45 {offsets = [40, 0], sizes = [8, 32], strides = [1, 1]} : vector<80x32xf32> to vector<8x32xf32>
    %58 = arith.addf %56, %57 : vector<8x32xf32>
    %59 = vector.extract_strided_slice %45 {offsets = [48, 0], sizes = [8, 32], strides = [1, 1]} : vector<80x32xf32> to vector<8x32xf32>
    %60 = arith.addf %58, %59 : vector<8x32xf32>
    %61 = vector.extract_strided_slice %45 {offsets = [56, 0], sizes = [8, 32], strides = [1, 1]} : vector<80x32xf32> to vector<8x32xf32>
    %62 = arith.addf %60, %61 : vector<8x32xf32>
    %63 = vector.extract_strided_slice %45 {offsets = [64, 0], sizes = [8, 32], strides = [1, 1]} : vector<80x32xf32> to vector<8x32xf32>
    %64 = arith.addf %62, %63 : vector<8x32xf32>
    %65 = vector.extract_strided_slice %45 {offsets = [72, 0], sizes = [8, 32], strides = [1, 1]} : vector<80x32xf32> to vector<8x32xf32>
    %66 = arith.addf %64, %65 : vector<8x32xf32>
    %cst_15 = arith.constant 1.000000e-01 : f32
    %67 = vector.broadcast %cst_15 : f32 to vector<8x32xf32>
    %68 = arith.mulf %66, %67 : vector<8x32xf32>
    %cst_16 = arith.constant 0.000000e+00 : f32
    %69 = vector.broadcast %cst_16 : f32 to vector<8x32xf32>
    %70 = vector.extract_strided_slice %45 {offsets = [0, 0], sizes = [8, 32], strides = [1, 1]} : vector<80x32xf32> to vector<8x32xf32>
    %71 = arith.subf %70, %68 : vector<8x32xf32>
    %72 = arith.mulf %71, %71 : vector<8x32xf32>
    %73 = arith.addf %69, %72 : vector<8x32xf32>
    %74 = vector.extract_strided_slice %45 {offsets = [8, 0], sizes = [8, 32], strides = [1, 1]} : vector<80x32xf32> to vector<8x32xf32>
    %75 = arith.subf %74, %68 : vector<8x32xf32>
    %76 = arith.mulf %75, %75 : vector<8x32xf32>
    %77 = arith.addf %73, %76 : vector<8x32xf32>
    %78 = vector.extract_strided_slice %45 {offsets = [16, 0], sizes = [8, 32], strides = [1, 1]} : vector<80x32xf32> to vector<8x32xf32>
    %79 = arith.subf %78, %68 : vector<8x32xf32>
    %80 = arith.mulf %79, %79 : vector<8x32xf32>
    %81 = arith.addf %77, %80 : vector<8x32xf32>
    %82 = vector.extract_strided_slice %45 {offsets = [24, 0], sizes = [8, 32], strides = [1, 1]} : vector<80x32xf32> to vector<8x32xf32>
    %83 = arith.subf %82, %68 : vector<8x32xf32>
    %84 = arith.mulf %83, %83 : vector<8x32xf32>
    %85 = arith.addf %81, %84 : vector<8x32xf32>
    %86 = vector.extract_strided_slice %45 {offsets = [32, 0], sizes = [8, 32], strides = [1, 1]} : vector<80x32xf32> to vector<8x32xf32>
    %87 = arith.subf %86, %68 : vector<8x32xf32>
    %88 = arith.mulf %87, %87 : vector<8x32xf32>
    %89 = arith.addf %85, %88 : vector<8x32xf32>
    %90 = vector.extract_strided_slice %45 {offsets = [40, 0], sizes = [8, 32], strides = [1, 1]} : vector<80x32xf32> to vector<8x32xf32>
    %91 = arith.subf %90, %68 : vector<8x32xf32>
    %92 = arith.mulf %91, %91 : vector<8x32xf32>
    %93 = arith.addf %89, %92 : vector<8x32xf32>
    %94 = vector.extract_strided_slice %45 {offsets = [48, 0], sizes = [8, 32], strides = [1, 1]} : vector<80x32xf32> to vector<8x32xf32>
    %95 = arith.subf %94, %68 : vector<8x32xf32>
    %96 = arith.mulf %95, %95 : vector<8x32xf32>
    %97 = arith.addf %93, %96 : vector<8x32xf32>
    %98 = vector.extract_strided_slice %45 {offsets = [56, 0], sizes = [8, 32], strides = [1, 1]} : vector<80x32xf32> to vector<8x32xf32>
    %99 = arith.subf %98, %68 : vector<8x32xf32>
    %100 = arith.mulf %99, %99 : vector<8x32xf32>
    %101 = arith.addf %97, %100 : vector<8x32xf32>
    %102 = vector.extract_strided_slice %45 {offsets = [64, 0], sizes = [8, 32], strides = [1, 1]} : vector<80x32xf32> to vector<8x32xf32>
    %103 = arith.subf %102, %68 : vector<8x32xf32>
    %104 = arith.mulf %103, %103 : vector<8x32xf32>
    %105 = arith.addf %101, %104 : vector<8x32xf32>
    %106 = vector.extract_strided_slice %45 {offsets = [72, 0], sizes = [8, 32], strides = [1, 1]} : vector<80x32xf32> to vector<8x32xf32>
    %107 = arith.subf %106, %68 : vector<8x32xf32>
    %108 = arith.mulf %107, %107 : vector<8x32xf32>
    %109 = arith.addf %105, %108 : vector<8x32xf32>
    %cst_17 = arith.constant 0.111111112 : f32
    %110 = vector.broadcast %cst_17 : f32 to vector<8x32xf32>
    %111 = arith.mulf %109, %110 : vector<8x32xf32>
    %c0_18 = arith.constant 0 : index
    %c0_19 = arith.constant 0 : index
    %112 = vector.load %arg6[%c0_18, %c0_19] : memref<8x32xf32, #tpu.memory_space<vmem>>, vector<8x32xf32>
    tpu.vector_store %arg6[%c0_18, %c0_19], %68 {strides = array<i32>} : memref<8x32xf32, #tpu.memory_space<vmem>>, vector<8x32xf32>,
    %cst_20 = arith.constant 0.000000e+00 : f32
    %113 = vector.broadcast %cst_20 : f32 to vector<8x32xf32>
    %114 = arith.maximumf %111, %113 : vector<8x32xf32>
    %115 = math.sqrt %114 : vector<8x32xf32>
    %c0_21 = arith.constant 0 : index
    %c0_22 = arith.constant 0 : index
    %116 = vector.load %arg7[%c0_21, %c0_22] : memref<8x32xf32, #tpu.memory_space<vmem>>, vector<8x32xf32>
    tpu.vector_store %arg7[%c0_21, %c0_22], %115 {strides = array<i32>} : memref<8x32xf32, #tpu.memory_space<vmem>>, vector<8x32xf32>,
    return
  }
}

</mosaic_0001>

<llo_original>
// kernel: tpu_custom_call.1
$region0: #{tpu_custom_call.1}
  #allocation0 [shape = 'u32[]', space=smem, size = 0x4, offset = 0x4, fixed_abs, tag = 'smem constant byte address 0x4 - core index']
  #allocation1 [shape = 'u32[144,128]{1,0:T(1,128)}', space=vmem, size = 0x12000, scoped, tag = 'internal scratch']
  #allocation2 [shape = 's32[1]{0:T(128)S(6)}', space=smem, size = 0x200, scoped, tag = 'scoped memory for tpu_custom_call.1']
  %s0 = inlined_call_operand.<no memory space> [shape: s32[1], index: 0, kind: input, shape index: {}]
  %s1 = inlined_call_operand.vmem [shape: bf16[8,32], index: 1, kind: input, shape index: {}]
  %s2 = inlined_call_operand.vmem [shape: bf16[32,128], index: 2, kind: input, shape index: {}]
  %s3 = inlined_call_operand.vmem [shape: f32[1,128], index: 3, kind: input, shape index: {}]
  %s4 = inlined_call_operand.vmem [shape: bf16[128,32], index: 4, kind: input, shape index: {}]
  %s5 = inlined_call_operand.vmem [shape: f32[1,32], index: 5, kind: input, shape index: {}]
  %s6 = inlined_call_operand.hbm [shape: f32[8,32], index: 6, kind: output, shape index: {0}]
  %s7 = inlined_call_operand.hbm [shape: f32[8,32], index: 7, kind: output, shape index: {1}]
  %8 = xla_tuple %s6, %s7
  %s9 = sld [smem:[#allocation0]]
  $region42: #{tpu_custom_call.1} parent=0
    _
  %s11 = ssub.s32 1, %s9
  %s12 = scalar_select 0, %s11, %s9
  %13 = sst [smem:[#allocation2]] %s0
  $region1: #{tpu_custom_call.1} parent=0
    #allocation3 [shape = 'u8[4096]{0}', space=vmem, size = 0x1000, scoped, tag = 'output window, operand 0, single buffered']
    #allocation4 [shape = 's32[1]{0}', space=sflag, size = 0x4, scoped, tag = 'scoped memory for tpu_custom_call.1']
    #allocation5 [shape = 'u8[4096]{0}', space=vmem, size = 0x1000, scoped, tag = 'output window, operand 1, single buffered']
    #allocation6 [shape = 's32[1]{0}', space=sflag, size = 0x4, scoped, tag = 'scoped memory for tpu_custom_call.1']
    %14 = vsyncpa [#allocation4], 0
    %15 = vsyncpa [#allocation6], 0
    // Predicated region
    $region2: #{tpu_custom_call.1} parent=1 // pred_check
      _
    $region3: #{tpu_custom_call.1} parent=1 // pred_check_branch
      %17 = sbr.rel (0) target = $region5
    $region4: #{tpu_custom_call.1} parent=1 // pred_region
      _
    $region5: #{tpu_custom_call.1} parent=1 // pred_fallthru
      _
    // Predicated region
    $region6: #{tpu_custom_call.1} parent=1 // pred_check
      _
    $region7: #{tpu_custom_call.1} parent=1 // pred_check_branch
      %19 = sbr.rel (0) target = $region9
    $region8: #{tpu_custom_call.1} parent=1 // pred_region
      _
    $region9: #{tpu_custom_call.1} parent=1 // pred_fallthru
      _
    // Predicated region
    $region10: #{tpu_custom_call.1} parent=1 // pred_check
      _
    $region11: #{tpu_custom_call.1} parent=1 // pred_check_branch
      %21 = sbr.rel (0) target = $region13
    $region12: #{tpu_custom_call.1} parent=1 // pred_region
      _
    $region13: #{tpu_custom_call.1} parent=1 // pred_fallthru
      _
    // Predicated region
    $region14: #{tpu_custom_call.1} parent=1 // pred_check
      _
    $region15: #{tpu_custom_call.1} parent=1 // pred_check_branch
      %23 = sbr.rel (0) target = $region17
    $region16: #{tpu_custom_call.1} parent=1 // pred_region
      _
    $region17: #{tpu_custom_call.1} parent=1 // pred_fallthru
      _
    // Predicated region
    $region18: #{tpu_custom_call.1} parent=1 // pred_check
      _
    $region19: #{tpu_custom_call.1} parent=1 // pred_check_branch
      %25 = sbr.rel (0) target = $region21
    $region20: #{tpu_custom_call.1} parent=1 // pred_region
      _
    $region21: #{tpu_custom_call.1} parent=1 // pred_fallthru
      _
    // Predicated region
    $region22: #{tpu_custom_call.1} parent=1 // pred_check
      _
    $region23: #{tpu_custom_call.1} parent=1 // pred_check_branch
      %27 = sbr.rel (0) target = $region25
    $region24: #{tpu_custom_call.1} parent=1 // pred_region
      _
    $region25: #{tpu_custom_call.1} parent=1 // pred_fallthru
      _
    %v29 = vld [vmem:[%s1] sm:$0xf]
    %v30 = vld [vmem:[%s2] sm:$0xf]
    %v31 = vld [vmem:[%s2 + $0x4] sm:$0xf]
    %v32 = vld [vmem:[%s2 + $0x8] sm:$0xf]
    %v33 = vld [vmem:[%s2 + $0xc] sm:$0xf]
    %v34 = vld [vmem:[%s3] sm:$0x1]
    %v36 = vlaneseq
    %v37 = vshrl.u32 %v36, 7
    %v38 = vsub.s32 0, %v37
    %v39 = vrot.slane %v34, %v38
    %v45 = vunpack.c.l.b16 %v30
    %v46 = vunpack.c.l.b16 %v31
    %v47 = vunpack.c.l.b16 %v32
    %v48 = vunpack.c.l.b16 %v33
    %v49 = vpack.c.b16 %v46, %v45
    %v50 = vpack.c.b16 %v48, %v47
    %vm53 = vcmask 261120
    %v55 = vsel %vm53, %v29, 0
    %57 = vmatprep.subr.bf16.mxu0 0
    %58 = vmatpush1.bf16.msra.mxu0 %v49
    %59 = vmatprep.subr.bf16.mxu0 0
    %60 = vmatpush1.bf16.msra.mxu0 %v50
    %61 = vmatprep.subr.bf16.mxu0 0
    %62 = vmatpush1.bf16.msra.mxu0 0
    %63 = vmatprep.subr.bf16.mxu0 0
    %64 = vmatpush1.bf16.msra.mxu0 0
    %65 = vmatprep.subr.bf16.mxu0 0
    %66 = vmatpush1.bf16.msra.mxu0 0
    %67 = vmatprep.subr.bf16.mxu0 0
    %68 = vmatpush1.bf16.msra.mxu0 0
    %69 = vmatprep.subr.bf16.mxu0 0
    %70 = vmatpush1.bf16.msra.mxu0 0
    %71 = vmatprep.subr.bf16.mxu0 0
    %72 = vmatpush1.bf16.msra.mxu0 0
    %73 = vmatprep.subr.bf16.mxu0 0
    %74 = vmatpush1.bf16.msra.mxu0 0
    %75 = vmatprep.subr.bf16.mxu0 0
    %76 = vmatpush1.bf16.msra.mxu0 0
    %77 = vmatprep.subr.bf16.mxu0 0
    %78 = vmatpush1.bf16.msra.mxu0 0
    %79 = vmatprep.subr.bf16.mxu0 0
    %80 = vmatpush1.bf16.msra.mxu0 0
    %81 = vmatprep.subr.bf16.mxu0 0
    %82 = vmatpush1.bf16.msra.mxu0 0
    %83 = vmatprep.subr.bf16.mxu0 0
    %84 = vmatpush1.bf16.msra.mxu0 0
    %85 = vmatprep.subr.bf16.mxu0 0
    %86 = vmatpush1.bf16.msra.mxu0 0
    %87 = vmatprep.subr.bf16.mxu0 0
    %88 = vmatpush1.bf16.msra.mxu0 0
    %89 = vmatprep.mubr.bf16.mxu0 0
    %90 = vmatmul.mubr.bf16.gmra.mrb[0].mxu0 %v55
    %v91 = vpop.f32.mrb[0].mxu0
    %v92 = vadd.f32 %v39, %v91
    %v93 = vpop.f32.mrb[0].mxu0
    %v94 = vpop.f32.mrb[0].mxu0
    %v95 = vpop.f32.mrb[0].mxu0
    %96 = vdwg.mxu0
    %v97 = vmax.f32 %v92, 0.0
    %v98 = vlaneseq
    %v99 = vshrl.u32 %v98, 7
    %v100 = vadd.s32 %v99, 8
    %v101 = vadd.s32 %v99, 16
    %v102 = vadd.s32 %v99, 24
    %v103 = vadd.s32 %v99, 32
    %v104 = vadd.s32 %v99, 40
    %v105 = vadd.s32 %v99, 48
    %v106 = vadd.s32 %v99, 56
    %v107 = vadd.s32 %v99, 64
    %v108 = vadd.s32 %v99, 72
    %v109 = vlaneseq
    %v110 = vand.u32 %v109, 127
    %s111 = sld [smem:[#allocation2]]
    %v112 = vmul.u32 %v99, 128
    %v113 = vmul.u32 %v100, 128
    %v114 = vmul.u32 %v101, 128
    %v115 = vmul.u32 %v102, 128
    %v116 = vmul.u32 %v103, 128
    %v117 = vmul.u32 %v104, 128
    %v118 = vmul.u32 %v105, 128
    %v119 = vmul.u32 %v106, 128
    %v120 = vmul.u32 %v107, 128
    %v121 = vmul.u32 %v108, 128
    %v122 = vadd.s32 %v112, %v110
    %v123 = vadd.s32 %v113, %v110
    %v124 = vadd.s32 %v114, %v110
    %v125 = vadd.s32 %v115, %v110
    %v126 = vadd.s32 %v116, %v110
    %v127 = vadd.s32 %v117, %v110
    %v128 = vadd.s32 %v118, %v110
    %v129 = vadd.s32 %v119, %v110
    %v130 = vadd.s32 %v120, %v110
    %v131 = vadd.s32 %v121, %v110
    %s132 = smul.u32 %s111, 2654435769
    %v133 = vstv %s132
    %v134 = vxor.u32 %v122, %v133
    %v135 = vxor.u32 %v123, %v133
    %v136 = vxor.u32 %v124, %v133
    %v137 = vxor.u32 %v125, %v133
    %v138 = vxor.u32 %v126, %v133
    %v139 = vxor.u32 %v127, %v133
    %v140 = vxor.u32 %v128, %v133
    %v141 = vxor.u32 %v129, %v133
    %v142 = vxor.u32 %v130, %v133
    %v143 = vxor.u32 %v131, %v133
    %v144 = vshrl.u32 %v134, 16
    %v145 = vshrl.u32 %v135, 16
    %v146 = vshrl.u32 %v136, 16
    %v147 = vshrl.u32 %v137, 16
    %v148 = vshrl.u32 %v138, 16
    %v149 = vshrl.u32 %v139, 16
    %v150 = vshrl.u32 %v140, 16
    %v151 = vshrl.u32 %v141, 16
    %v152 = vshrl.u32 %v142, 16
    %v153 = vshrl.u32 %v143, 16
    %v154 = vxor.u32 %v134, %v144
    %v155 = vxor.u32 %v135, %v145
    %v156 = vxor.u32 %v136, %v146
    %v157 = vxor.u32 %v137, %v147
    %v158 = vxor.u32 %v138, %v148
    %v159 = vxor.u32 %v139, %v149
    %v160 = vxor.u32 %v140, %v150
    %v161 = vxor.u32 %v141, %v151
    %v162 = vxor.u32 %v142, %v152
    %v163 = vxor.u32 %v143, %v153
    %v164 = vmul.u32 %v154, 2146121005
    %v165 = vmul.u32 %v155, 2146121005
    %v166 = vmul.u32 %v156, 2146121005
    %v167 = vmul.u32 %v157, 2146121005
    %v168 = vmul.u32 %v158, 2146121005
    %v169 = vmul.u32 %v159, 2146121005
    %v170 = vmul.u32 %v160, 2146121005
    %v171 = vmul.u32 %v161, 2146121005
    %v172 = vmul.u32 %v162, 2146121005
    %v173 = vmul.u32 %v163, 2146121005
    %v174 = vshrl.u32 %v164, 15
    %v175 = vshrl.u32 %v165, 15
    %v176 = vshrl.u32 %v166, 15
    %v177 = vshrl.u32 %v167, 15
    %v178 = vshrl.u32 %v168, 15
    %v179 = vshrl.u32 %v169, 15
    %v180 = vshrl.u32 %v170, 15
    %v181 = vshrl.u32 %v171, 15
    %v182 = vshrl.u32 %v172, 15
    %v183 = vshrl.u32 %v173, 15
    %v184 = vxor.u32 %v164, %v174
    %v185 = vxor.u32 %v165, %v175
    %v186 = vxor.u32 %v166, %v176
    %v187 = vxor.u32 %v167, %v177
    %v188 = vxor.u32 %v168, %v178
    %v189 = vxor.u32 %v169, %v179
    %v190 = vxor.u32 %v170, %v180
    %v191 = vxor.u32 %v171, %v181
    %v192 = vxor.u32 %v172, %v182
    %v193 = vxor.u32 %v173, %v183
    %v194 = vmul.u32 %v184, 2221713035
    %v195 = vmul.u32 %v185, 2221713035
    %v196 = vmul.u32 %v186, 2221713035
    %v197 = vmul.u32 %v187, 2221713035
    %v198 = vmul.u32 %v188, 2221713035
    %v199 = vmul.u32 %v189, 2221713035
    %v200 = vmul.u32 %v190, 2221713035
    %v201 = vmul.u32 %v191, 2221713035
    %v202 = vmul.u32 %v192, 2221713035
    %v203 = vmul.u32 %v193, 2221713035
    %v204 = vshrl.u32 %v194, 16
    %v205 = vshrl.u32 %v195, 16
    %v206 = vshrl.u32 %v196, 16
    %v207 = vshrl.u32 %v197, 16
    %v208 = vshrl.u32 %v198, 16
    %v209 = vshrl.u32 %v199, 16
    %v210 = vshrl.u32 %v200, 16
    %v211 = vshrl.u32 %v201, 16
    %v212 = vshrl.u32 %v202, 16
    %v213 = vshrl.u32 %v203, 16
    %v214 = vxor.u32 %v194, %v204
    %v215 = vxor.u32 %v195, %v205
    %v216 = vxor.u32 %v196, %v206
    %v217 = vxor.u32 %v197, %v207
    %v218 = vxor.u32 %v198, %v208
    %v219 = vxor.u32 %v199, %v209
    %v220 = vxor.u32 %v200, %v210
    %v221 = vxor.u32 %v201, %v211
    %v222 = vxor.u32 %v202, %v212
    %v223 = vxor.u32 %v203, %v213
    %v224 = vshrl.u32 %v214, 1
    %v225 = vshrl.u32 %v215, 1
    %v226 = vshrl.u32 %v216, 1
    %v227 = vshrl.u32 %v217, 1
    %v228 = vshrl.u32 %v218, 1
    %v229 = vshrl.u32 %v219, 1
    %v230 = vshrl.u32 %v220, 1
    %v231 = vshrl.u32 %v221, 1
    %v232 = vshrl.u32 %v222, 1
    %v233 = vshrl.u32 %v223, 1
    %vm234 = vcmp.ge.s32.totalorder %v224, 429496729
    %vm235 = vcmp.ge.s32.totalorder %v225, 429496729
    %vm236 = vcmp.ge.s32.totalorder %v226, 429496729
    %vm237 = vcmp.ge.s32.totalorder %v227, 429496729
    %vm238 = vcmp.ge.s32.totalorder %v228, 429496729
    %vm239 = vcmp.ge.s32.totalorder %v229, 429496729
    %vm240 = vcmp.ge.s32.totalorder %v230, 429496729
    %vm241 = vcmp.ge.s32.totalorder %v231, 429496729
    %vm242 = vcmp.ge.s32.totalorder %v232, 429496729
    %vm243 = vcmp.ge.s32.totalorder %v233, 429496729
    %v244 = vsel %vm234, 1, 0
    %v245 = vsel %vm235, 1, 0
    %v246 = vsel %vm236, 1, 0
    %v247 = vsel %vm237, 1, 0
    %v248 = vsel %vm238, 1, 0
    %v249 = vsel %vm239, 1, 0
    %v250 = vsel %vm240, 1, 0
    %v251 = vsel %vm241, 1, 0
    %v252 = vsel %vm242, 1, 0
    %v253 = vsel %vm243, 1, 0
    %v254 = vcvt.s32.f32 %v244
    %v255 = vcvt.s32.f32 %v245
    %v256 = vcvt.s32.f32 %v246
    %v257 = vcvt.s32.f32 %v247
    %v258 = vcvt.s32.f32 %v248
    %v259 = vcvt.s32.f32 %v249
    %v260 = vcvt.s32.f32 %v250
    %v261 = vcvt.s32.f32 %v251
    %v262 = vcvt.s32.f32 %v252
    %v263 = vcvt.s32.f32 %v253
    %v264 = vmul.f32 %v254, 1.25
    %v265 = vmul.f32 %v255, 1.25
    %v266 = vmul.f32 %v256, 1.25
    %v267 = vmul.f32 %v257, 1.25
    %v268 = vmul.f32 %v258, 1.25
    %v269 = vmul.f32 %v259, 1.25
    %v270 = vmul.f32 %v260, 1.25
    %v271 = vmul.f32 %v261, 1.25
    %v272 = vmul.f32 %v262, 1.25
    %v273 = vmul.f32 %v263, 1.25
    %v274 = vmul.f32 %v97, %v264
    %v275 = vmul.f32 %v97, %v265
    %v276 = vmul.f32 %v97, %v266
    %v277 = vmul.f32 %v97, %v267
    %v278 = vmul.f32 %v97, %v268
    %v279 = vmul.f32 %v97, %v269
    %v280 = vmul.f32 %v97, %v270
    %v281 = vmul.f32 %v97, %v271
    %v282 = vmul.f32 %v97, %v272
    %v283 = vmul.f32 %v97, %v273
    %v284 = vpack.c.bf16 %v275, %v274
    %v285 = vpack.c.bf16 %v277, %v276
    %v286 = vpack.c.bf16 %v279, %v278
    %v287 = vpack.c.bf16 %v281, %v280
    %v288 = vpack.c.bf16 %v283, %v282
    %v289 = vld [vmem:[%s4] sm:$0xf]
    %v290 = vld [vmem:[%s4 + $0x4] sm:$0xf]
    %v291 = vld [vmem:[%s4 + $0x8] sm:$0xf]
    %v292 = vld [vmem:[%s4 + $0xc] sm:$0xf]
    %v293 = vld [vmem:[%s4 + $0x10] sm:$0xf]
    %v294 = vld [vmem:[%s4 + $0x14] sm:$0xf]
    %v295 = vld [vmem:[%s4 + $0x18] sm:$0xf]
    %v296 = vld [vmem:[%s4 + $0x1c] sm:$0xf]
    %v297 = vld [vmem:[%s4 + $0x20] sm:$0xf]
    %v298 = vld [vmem:[%s4 + $0x24] sm:$0xf]
    %v299 = vld [vmem:[%s4 + $0x28] sm:$0xf]
    %v300 = vld [vmem:[%s4 + $0x2c] sm:$0xf]
    %v301 = vld [vmem:[%s4 + $0x30] sm:$0xf]
    %v302 = vld [vmem:[%s4 + $0x34] sm:$0xf]
    %v303 = vld [vmem:[%s4 + $0x38] sm:$0xf]
    %v304 = vld [vmem:[%s4 + $0x3c] sm:$0xf]
    %v305 = vld [vmem:[%s5] sm:$0x1]
    %v307 = vlaneseq
    %v308 = vshrl.u32 %v307, 7
    %v309 = vsub.s32 0, %v308
    %v310 = vrot.slane %v305, %v309
    %v328 = vunpack.c.l.b16 %v289
    %v329 = vunpack.c.l.b16 %v290
    %v330 = vunpack.c.l.b16 %v291
    %v331 = vunpack.c.l.b16 %v292
    %v332 = vunpack.c.l.b16 %v293
    %v333 = vunpack.c.l.b16 %v294
    %v334 = vunpack.c.l.b16 %v295
    %v335 = vunpack.c.l.b16 %v296
    %v336 = vunpack.c.l.b16 %v297
    %v337 = vunpack.c.l.b16 %v298
    %v338 = vunpack.c.l.b16 %v299
    %v339 = vunpack.c.l.b16 %v300
    %v340 = vunpack.c.l.b16 %v301
    %v341 = vunpack.c.l.b16 %v302
    %v342 = vunpack.c.l.b16 %v303
    %v343 = vunpack.c.l.b16 %v304
    %v344 = vpack.c.b16 %v329, %v328
    %v345 = vpack.c.b16 %v331, %v330
    %v346 = vpack.c.b16 %v333, %v332
    %v347 = vpack.c.b16 %v335, %v334
    %v348 = vpack.c.b16 %v337, %v336
    %v349 = vpack.c.b16 %v339, %v338
    %v350 = vpack.c.b16 %v341, %v340
    %v351 = vpack.c.b16 %v343, %v342
    %360 = vmatprep.subr.bf16.mxu0 0
    %361 = vmatpush1.bf16.msra.mxu0 %v344
    %362 = vmatprep.subr.bf16.mxu0 0
    %363 = vmatpush1.bf16.msra.mxu0 %v345
    %364 = vmatprep.subr.bf16.mxu0 0
    %365 = vmatpush1.bf16.msra.mxu0 %v346
    %366 = vmatprep.subr.bf16.mxu0 0
    %367 = vmatpush1.bf16.msra.mxu0 %v347
    %368 = vmatprep.subr.bf16.mxu0 0
    %369 = vmatpush1.bf16.msra.mxu0 %v348
    %370 = vmatprep.subr.bf16.mxu0 0
    %371 = vmatpush1.bf16.msra.mxu0 %v349
    %372 = vmatprep.subr.bf16.mxu0 0
    %373 = vmatpush1.bf16.msra.mxu0 %v350
    %374 = vmatprep.subr.bf16.mxu0 0
    %375 = vmatpush1.bf16.msra.mxu0 %v351
    %376 = vmatprep.subr.bf16.mxu0 0
    %377 = vmatpush1.bf16.msra.mxu0 0
    %378 = vmatprep.subr.bf16.mxu0 0
    %379 = vmatpush1.bf16.msra.mxu0 0
    %380 = vmatprep.subr.bf16.mxu0 0
    %381 = vmatpush1.bf16.msra.mxu0 0
    %382 = vmatprep.subr.bf16.mxu0 0
    %383 = vmatpush1.bf16.msra.mxu0 0
    %384 = vmatprep.subr.bf16.mxu0 0
    %385 = vmatpush1.bf16.msra.mxu0 0
    %386 = vmatprep.subr.bf16.mxu0 0
    %387 = vmatpush1.bf16.msra.mxu0 0
    %388 = vmatprep.subr.bf16.mxu0 0
    %389 = vmatpush1.bf16.msra.mxu0 0
    %390 = vmatprep.subr.bf16.mxu0 0
    %391 = vmatpush1.bf16.msra.mxu0 0
    %392 = vmatprep.mubr.bf16.mxu0 0
    %393 = vmatmul.mubr.bf16.gmra.mrb[0].mxu0 %v284
    %v394 = vpop.f32.mrb[0].mxu0
    %v395 = vadd.f32 %v310, %v394
    %v396 = vpop.f32.mrb[0].mxu0
    %v397 = vpop.f32.mrb[0].mxu0
    %v398 = vadd.f32 %v310, %v397
    %v399 = vpop.f32.mrb[0].mxu0
    %400 = vmatprep.mubr.bf16.mxu0 0
    %401 = vmatmul.mubr.bf16.gmra.mrb[0].mxu0 %v285
    %v402 = vpop.f32.mrb[0].mxu0
    %v403 = vadd.f32 %v310, %v402
    %v404 = vpop.f32.mrb[0].mxu0
    %v405 = vpop.f32.mrb[0].mxu0
    %v406 = vadd.f32 %v310, %v405
    %v407 = vpop.f32.mrb[0].mxu0
    %408 = vmatprep.mubr.bf16.mxu0 0
    %409 = vmatmul.mubr.bf16.gmra.mrb[0].mxu0 %v286
    %v410 = vpop.f32.mrb[0].mxu0
    %v411 = vadd.f32 %v310, %v410
    %v412 = vpop.f32.mrb[0].mxu0
    %v413 = vpop.f32.mrb[0].mxu0
    %v414 = vadd.f32 %v310, %v413
    %v415 = vpop.f32.mrb[0].mxu0
    %416 = vmatprep.mubr.bf16.mxu0 0
    %417 = vmatmul.mubr.bf16.gmra.mrb[0].mxu0 %v287
    %v418 = vpop.f32.mrb[0].mxu0
    %v419 = vadd.f32 %v310, %v418
    %v420 = vpop.f32.mrb[0].mxu0
    %v421 = vpop.f32.mrb[0].mxu0
    %v422 = vadd.f32 %v310, %v421
    %v423 = vpop.f32.mrb[0].mxu0
    %424 = vmatprep.mubr.bf16.mxu0 0
    %425 = vmatmul.mubr.bf16.gmra.mrb[0].mxu0 %v288
    %v426 = vpop.f32.mrb[0].mxu0
    %v427 = vadd.f32 %v310, %v426
    %v428 = vpop.f32.mrb[0].mxu0
    %v429 = vpop.f32.mrb[0].mxu0
    %v430 = vadd.f32 %v310, %v429
    %v431 = vpop.f32.mrb[0].mxu0
    %432 = vdwg.mxu0
    %v433 = vadd.f32 %v395, 0.0
    %v434 = vadd.f32 %v433, %v398
    %v435 = vadd.f32 %v434, %v403
    %v436 = vadd.f32 %v435, %v406
    %v437 = vadd.f32 %v436, %v411
    %v438 = vadd.f32 %v437, %v414
    %v439 = vadd.f32 %v438, %v419
    %v440 = vadd.f32 %v439, %v422
    %v441 = vadd.f32 %v440, %v427
    %v442 = vadd.f32 %v441, %v430
    %v443 = vmul.f32 %v442, 0.1
    %v444 = vsub.f32 %v395, %v443
    %v445 = vmul.f32 %v444, %v444
    %v446 = vadd.f32 %v445, 0.0
    %v447 = vsub.f32 %v398, %v443
    %v448 = vmul.f32 %v447, %v447
    %v449 = vadd.f32 %v446, %v448
    %v450 = vsub.f32 %v403, %v443
    %v451 = vmul.f32 %v450, %v450
    %v452 = vadd.f32 %v449, %v451
    %v453 = vsub.f32 %v406, %v443
    %v454 = vmul.f32 %v453, %v453
    %v455 = vadd.f32 %v452, %v454
    %v456 = vsub.f32 %v411, %v443
    %v457 = vmul.f32 %v456, %v456
    %v458 = vadd.f32 %v455, %v457
    %v459 = vsub.f32 %v414, %v443
    %v460 = vmul.f32 %v459, %v459
    %v461 = vadd.f32 %v458, %v460
    %v462 = vsub.f32 %v419, %v443
    %v463 = vmul.f32 %v462, %v462
    %v464 = vadd.f32 %v461, %v463
    %v465 = vsub.f32 %v422, %v443
    %v466 = vmul.f32 %v465, %v465
    %v467 = vadd.f32 %v464, %v466
    %v468 = vsub.f32 %v427, %v443
    %v469 = vmul.f32 %v468, %v468
    %v470 = vadd.f32 %v467, %v469
    %v471 = vsub.f32 %v430, %v443
    %v472 = vmul.f32 %v471, %v471
    %v473 = vadd.f32 %v470, %v472
    %v474 = vmul.f32 %v473, 0.11111111
    %475 = vst.msk [vmem:[#allocation3] sm:$0xff] %vm53, %v443
    %v476 = vmax.f32 %v474, 0.0
    %v477 = vrsqrt.pop %v476
    %v478 = vmul.f32 %v476, %v477
    %vm479 = vcmp.eq.f32.partialorder %v476, inf
    %v480 = vsel %vm479, %v476, %v478
    %vm481 = vcmp.eq.f32.partialorder %v476, 0.0
    %v482 = vand.u32 %v476, 2147483648
    %v483 = vsel %vm481, %v482, %v480
    %484 = vst.msk [vmem:[#allocation5] sm:$0xff] %vm53, %v483
    // Predicated region
    $region26: #{tpu_custom_call.1} parent=1 // pred_check
      _
    $region27: #{tpu_custom_call.1} parent=1 // pred_check_branch
      %486 = sbr.rel (0) target = $region29
    $region28: #{tpu_custom_call.1} parent=1 // pred_region
      %s488 = ssub.s32 128, 128
      %489 = vsyncadd [#allocation4], %s488
      %s491 = sshll.u32 [#allocation3], 4
      %s492 = int_to_ptr.vmem [resolvable:$true] %s491
      %494 = dma.vmem_to_hbm [thread:$0]  %s492, 128, %s6, [#allocation4]
    $region29: #{tpu_custom_call.1} parent=1 // pred_fallthru
      _
    // Predicated region
    $region30: #{tpu_custom_call.1} parent=1 // pred_check
      _
    $region31: #{tpu_custom_call.1} parent=1 // pred_check_branch
      %496 = sbr.rel (0) target = $region33
    $region32: #{tpu_custom_call.1} parent=1 // pred_region
      %s498 = ssub.s32 128, 128
      %499 = vsyncadd [#allocation6], %s498
      %s501 = sshll.u32 [#allocation5], 4
      %s502 = int_to_ptr.vmem [resolvable:$true] %s501
      %504 = dma.vmem_to_hbm [thread:$0]  %s502, 128, %s7, [#allocation6]
    $region33: #{tpu_custom_call.1} parent=1 // pred_fallthru
      _
    // Predicated region
    $region34: #{tpu_custom_call.1} parent=1 // pred_check
      _
    $region35: #{tpu_custom_call.1} parent=1 // pred_check_branch
      %506 = sbr.rel (0) target = $region37
    $region36: #{tpu_custom_call.1} parent=1 // pred_region
      %507 = dma.done [#allocation4], 128
    $region37: #{tpu_custom_call.1} parent=1 // pred_fallthru
      _
    // Predicated region
    $region38: #{tpu_custom_call.1} parent=1 // pred_check
      _
    $region39: #{tpu_custom_call.1} parent=1 // pred_check_branch
      %509 = sbr.rel (0) target = $region41
    $region40: #{tpu_custom_call.1} parent=1 // pred_region
      %510 = dma.done [#allocation6], 128
    $region41: #{tpu_custom_call.1} parent=1 // pred_fallthru
      _
    %511 = vsyncpa [#allocation4], 1
    %512 = vsyncpa [#allocation6], 1

</llo_original>
